<compile_context>
chip_gen: v5e
topology: v5e:2x2
jax: 0.10.0
libtpu: 0.0.40
codegen_flags: <defaults>
</compile_context>

<pallas_src>
import math

import jax
import jax.numpy as jnp
from jax import lax
from jax.experimental import pallas as pl
from jax.experimental.pallas import tpu as pltpu

KH, KW = 3, 3          # kernel_size
SH, SW = 2, 2          # stride (dilation = 1, padding = 0)
CEIL_MODE = True       # "CeilModeTrue"


def _pool_out_size(in_size: int, k: int, s: int, ceil_mode: bool) -> int:
    if ceil_mode:
        out = math.ceil((in_size - k) / s) + 1
        # PyTorch rule: the last pooling window must start inside the input.
        if (out - 1) * s >= in_size:
            out -= 1
    else:
        out = (in_size - k) // s + 1
    return out


def _round_up(v: int, m: int) -> int:
    return -(-v // m) * m


def _vmem_limit_bytes() -> int:
    """Generation-aware scoped-VMEM request: v5e/v6e have 128 MiB physical,
    v7x only 64 MiB.  Ask for <= 3/4 of physical and never more than 64 MiB."""
    cap = 128 * 1024 * 1024
    try:
        cap = int(pltpu.get_tpu_info().vmem_capacity_bytes)
    except Exception:
        pass
    if cap <= 0:
        cap = 64 * 1024 * 1024
    return min((cap * 3) // 4, 64 * 1024 * 1024)


def _choose_block_planes(nc, in_rows, in_cols, oh, ow, w_pad,
                         plane_hbm_bytes, itemsize, vmem_limit):
    """Planes (n*c) per grid step: aim for >= ~8 grid steps so the auto-pipeline
    has DMAs to overlap and both v7x TensorCores get several steps each, but keep
    each input block >= ~1 MiB (amortize ~0.35us/step overhead) and keep the whole
    footprint (double-buffered blocks + scratch) inside the scoped-VMEM budget."""
    def tile_bytes(r, c):
        return _round_up(max(r, 1), 8) * _round_up(max(c, 1), 128) * itemsize

    per_plane = (2 * tile_bytes(in_rows, in_cols)     # input block, double-buffered
                 + 2 * tile_bytes(oh, ow)             # output block, double-buffered
                 + tile_bytes(w_pad, oh))             # b_ref scratch
    budget = (vmem_limit * 3) // 4                    # headroom for Mosaic internals
    bc_vmem = max(1, budget // max(per_plane, 1))
    bc_steps = pl.cdiv(nc, 8)                         # prefer >= 8 grid steps
    bc_size = max(1, (1 << 20) // max(plane_hbm_bytes, 1))   # >= ~1 MiB per block
    return int(max(1, min(nc, bc_vmem, max(bc_steps, bc_size))))


def _make_kernel(h, w, oh, ow, w_pad, folded):
    """One grid step = `bc` independent (n, c) planes.

    x_ref : (bc, h//2, 2*w) folded view when `folded` (lanes [0:w) = even input
            rows, lanes [w:2w) = odd rows), else (bc, h, w).
    o_ref : (bc, oh, ow)
    b_ref : (bc, w_pad, oh)  scratch: row-max with W on the sublane axis (plus
            the ceil-mode right-halo column), so the stride-2 column taps are
            cheap strided sublane reads.
    """

    def kernel(x_ref, o_ref, b_ref):
        bc = x_ref.shape[0]

        # ---- H (row) reduction: taps come straight from x_ref, no staging copy
        if folded:
            lo = x_ref[:, 0:oh, 0:w]           # window row 2*oy        (bc, oh, w)
            hi = x_ref[:, 0:oh, w:2 * w]       # window row 2*oy + 1    (bc, oh, w)
            r01 = jnp.maximum(lo, hi)
            # Last output row: its 3rd window row is the ceil-mode halo (out of
            # range) unless 2*oh < h; omitting it is exact under max.
            rm_last = r01[:, oh - 1:oh, :]
            if 2 * oh < h:                      # only for floor-mode-like shapes
                rm_last = jnp.maximum(rm_last, x_ref[:, oh:oh + 1, 0:w])
            if oh > 1:
                # Rows 0..oh-2: 3rd window row (2*oy + 2) is `lo` shifted by one
                # folded row -- a register sublane shift, no extra VMEM load.
                rm_main = jnp.maximum(r01[:, 0:oh - 1, :], lo[:, 1:oh, :])
                b_ref[:, 0:w, 0:oh - 1] = jnp.swapaxes(rm_main, 1, 2)
            b_ref[:, 0:w, oh - 1:oh] = jnp.swapaxes(rm_last, 1, 2)
        else:
            # Odd H under ceil mode: all three stride-2 sublane taps are in bounds.
            t0 = x_ref[:, pl.ds(0, oh, SH), :]
            t1 = x_ref[:, pl.ds(1, oh, SH), :]
            t2 = x_ref[:, pl.ds(2, oh, SH), :]
            rowmax = jnp.maximum(jnp.maximum(t0, t1), t2)
            b_ref[:, 0:w, :] = jnp.swapaxes(rowmax, 1, 2)

        # ---- ceil-mode right halo: replicate last valid column (exact under max)
        if w_pad > w:
            b_ref[:, w:w_pad, :] = jnp.broadcast_to(
                b_ref[:, w - 1:w, :], (bc, w_pad - w, oh))

        # ---- W (col) reduction: stride-2 sublane taps from the small scratch
        c0 = b_ref[:, pl.ds(0, ow, SW), :]
        c1 = b_ref[:, pl.ds(1, ow, SW), :]
        c2 = b_ref[:, pl.ds(2, ow, SW), :]
        colmax = jnp.maximum(jnp.maximum(c0, c1), c2)    # (bc, ow, oh)
        o_ref[...] = jnp.swapaxes(colmax, 1, 2)          # (bc, oh, ow)

    return kernel


@jax.jit
def maxpool2d(x_nchw: jax.Array) -> jax.Array:
    """MaxPool2d(3x3, stride 2, dilation 1, padding 0, ceil_mode=True) on NCHW."""
    n, c, h, w = x_nchw.shape
    oh = _pool_out_size(h, KH, SH, CEIL_MODE)
    ow = _pool_out_size(w, KW, SW, CEIL_MODE)
    nc = n * c
    w_pad = max(w, (ow - 1) * SW + KW)   # columns touched by the last (ceil) window

    # SH == 2: fold adjacent row pairs into the lane dim (a free HBM view) so the
    # kh = 0/1 taps are unit-stride lane slabs and lane utilization doubles.
    folded = (h % 2 == 0)
    if folded:
        x = x_nchw.reshape(nc, h // 2, 2 * w)
        in_rows, in_cols = h // 2, 2 * w
    else:
        x = x_nchw.reshape(nc, h, w)
        in_rows, in_cols = h, w

    vmem_limit = _vmem_limit_bytes()
    bc = _choose_block_planes(nc, in_rows, in_cols, oh, ow, w_pad,
                              h * w * x.dtype.itemsize, x.dtype.itemsize,
                              vmem_limit)

    # NOTE: blocks are whole (folded) planes; for extremely large spatial extents
    # one would add an H-tile grid axis with a 1-row halo to stay inside v7x VMEM.
    out = pl.pallas_call(
        _make_kernel(h, w, oh, ow, w_pad, folded),
        out_shape=jax.ShapeDtypeStruct((nc, oh, ow), x.dtype),
        grid=(pl.cdiv(nc, bc),),
        in_specs=[pl.BlockSpec((bc, in_rows, in_cols), lambda i: (i, 0, 0))],
        out_specs=pl.BlockSpec((bc, oh, ow), lambda i: (i, 0, 0)),
        scratch_shapes=[pltpu.VMEM((bc, w_pad, oh), x.dtype)],
        compiler_params=pltpu.CompilerParams(
            dimension_semantics=("parallel",),
            vmem_limit_bytes=vmem_limit,
        ),
    )(x)
    return out.reshape(n, c, oh, ow)


if __name__ == "__main__":
    key = jax.random.PRNGKey(0)
    x = jax.random.normal(key, (2, 4, 16, 16), dtype=jnp.float32)

    out = jax.block_until_ready(maxpool2d(x))
    assert out.shape == (2, 4, 8, 8), out.shape          # ceil_mode=True: 16 -> 8

    # Independent reference: reduce_window with -inf right/bottom padding
    # reproduces PyTorch ceil-mode max pooling exactly.
    n, c, h, w = x.shape
    oh = _pool_out_size(h, KH, SH, CEIL_MODE)
    ow = _pool_out_size(w, KW, SW, CEIL_MODE)
    ref = lax.reduce_window(
        x,
        -jnp.inf,
        lax.max,
        window_dimensions=(1, 1, KH, KW),
        window_strides=(1, 1, SH, SW),
        padding=((0, 0), (0, 0),
                 (0, (oh - 1) * SH + KH - h),
                 (0, (ow - 1) * SW + KW - w)),
    )
    assert ref.shape == out.shape
    assert bool(jnp.allclose(out, ref)), "mismatch vs reduce_window reference"

    print("KERNEL_OK")
</pallas_src>

<mosaic_0001>
module attributes {stable_mosaic.version = 11 : i64} {
  func.func @kernel(%arg0: i32, %arg1: memref<8x8x32xf32, #tpu.memory_space<vmem>>, %arg2: memref<8x8x8xf32, #tpu.memory_space<vmem>>, %arg3: memref<8x17x8xf32, #tpu.memory_space<vmem>>) attributes {dimension_semantics = [#tpu.dimension_semantics<parallel>], iteration_bounds = array<i64: 1>, scalar_prefetch = 0 : i64, scratch_operands = 1 : i64, tpu.core_type = #tpu.core_type<tc>, window_params = [{transform_indices = @transform_0, window_bounds = array<i64: 8, 8, 32>}, {transform_indices = @transform_1, window_bounds = array<i64: 8, 8, 8>}]} {
    %c0 = arith.constant 0 : index
    %c0_0 = arith.constant 0 : index
    %c0_1 = arith.constant 0 : index
    %0 = vector.load %arg1[%c0, %c0_0, %c0_1] : memref<8x8x32xf32, #tpu.memory_space<vmem>>, vector<8x8x16xf32>
    %c0_2 = arith.constant 0 : index
    %c0_3 = arith.constant 0 : index
    %c16 = arith.constant 16 : index
    %1 = vector.load %arg1[%c0_2, %c0_3, %c16] : memref<8x8x32xf32, #tpu.memory_space<vmem>>, vector<8x8x16xf32>
    %2 = arith.maximumf %0, %1 : vector<8x8x16xf32>
    %3 = vector.extract_strided_slice %2 {offsets = [0, 7, 0], sizes = [8, 1, 16], strides = [1, 1, 1]} : vector<8x8x16xf32> to vector<8x1x16xf32>
    %4 = vector.extract_strided_slice %2 {offsets = [0, 0, 0], sizes = [8, 7, 16], strides = [1, 1, 1]} : vector<8x8x16xf32> to vector<8x7x16xf32>
    %5 = vector.extract_strided_slice %0 {offsets = [0, 1, 0], sizes = [8, 7, 16], strides = [1, 1, 1]} : vector<8x8x16xf32> to vector<8x7x16xf32>
    %6 = arith.maximumf %4, %5 : vector<8x7x16xf32>
    %7 = tpu.transpose %6, [0, 2, 1] : vector<8x7x16xf32> -> vector<8x16x7xf32>
    %c0_4 = arith.constant 0 : index
    %c0_5 = arith.constant 0 : index
    %c0_6 = arith.constant 0 : index
    %8 = vector.load %arg3[%c0_4, %c0_5, %c0_6] : memref<8x17x8xf32, #tpu.memory_space<vmem>>, vector<8x16x7xf32>
    tpu.vector_store %arg3[%c0_4, %c0_5, %c0_6], %7 {strides = array<i32>} : memref<8x17x8xf32, #tpu.memory_space<vmem>>, vector<8x16x7xf32>,
    %9 = tpu.transpose %3, [0, 2, 1] : vector<8x1x16xf32> -> vector<8x16x1xf32>
    %c0_7 = arith.constant 0 : index
    %c0_8 = arith.constant 0 : index
    %c7 = arith.constant 7 : index
    %10 = vector.load %arg3[%c0_7, %c0_8, %c7] : memref<8x17x8xf32, #tpu.memory_space<vmem>>, vector<8x16x1xf32>
    tpu.vector_store %arg3[%c0_7, %c0_8, %c7], %9 {strides = array<i32>} : memref<8x17x8xf32, #tpu.memory_space<vmem>>, vector<8x16x1xf32>,
    %c0_9 = arith.constant 0 : index
    %c15 = arith.constant 15 : index
    %c0_10 = arith.constant 0 : index
    %11 = vector.load %arg3[%c0_9, %c15, %c0_10] : memref<8x17x8xf32, #tpu.memory_space<vmem>>, vector<8x1x8xf32>
    %c0_11 = arith.constant 0 : index
    %c16_12 = arith.constant 16 : index
    %c0_13 = arith.constant 0 : index
    %12 = vector.load %arg3[%c0_11, %c16_12, %c0_13] : memref<8x17x8xf32, #tpu.memory_space<vmem>>, vector<8x1x8xf32>
    tpu.vector_store %arg3[%c0_11, %c16_12, %c0_13], %11 {strides = array<i32>} : memref<8x17x8xf32, #tpu.memory_space<vmem>>, vector<8x1x8xf32>,
    %c0_14 = arith.constant 0 : index
    %c0_15 = arith.constant 0 : index
    %c0_16 = arith.constant 0 : index
    %13 = tpu.strided_load %arg3[%c0_14, %c0_15, %c0_16] {strides = array<i32: 1, 2, 1>} : memref<8x17x8xf32, #tpu.memory_space<vmem>>, vector<8x8x8xf32>
    %c0_17 = arith.constant 0 : index
    %c1 = arith.constant 1 : index
    %c0_18 = arith.constant 0 : index
    %14 = tpu.strided_load %arg3[%c0_17, %c1, %c0_18] {strides = array<i32: 1, 2, 1>} : memref<8x17x8xf32, #tpu.memory_space<vmem>>, vector<8x8x8xf32>
    %c0_19 = arith.constant 0 : index
    %c2 = arith.constant 2 : index
    %c0_20 = arith.constant 0 : index
    %15 = tpu.strided_load %arg3[%c0_19, %c2, %c0_20] {strides = array<i32: 1, 2, 1>} : memref<8x17x8xf32, #tpu.memory_space<vmem>>, vector<8x8x8xf32>
    %16 = arith.maximumf %13, %14 : vector<8x8x8xf32>
    %17 = arith.maximumf %16, %15 : vector<8x8x8xf32>
    %18 = tpu.transpose %17, [0, 2, 1] : vector<8x8x8xf32> -> vector<8x8x8xf32>
    %c0_21 = arith.constant 0 : index
    %c0_22 = arith.constant 0 : index
    %c0_23 = arith.constant 0 : index
    %19 = vector.load %arg2[%c0_21, %c0_22, %c0_23] : memref<8x8x8xf32, #tpu.memory_space<vmem>>, vector<8x8x8xf32>
    tpu.vector_store %arg2[%c0_21, %c0_22, %c0_23], %18 {strides = array<i32>} : memref<8x8x8xf32, #tpu.memory_space<vmem>>, vector<8x8x8xf32>,
    return
  }
  func.func @transform_0(%arg0: i32) -> (i32, i32, i32) {
    %c0_i32 = arith.constant 0 : i32
    %c0_i32_0 = arith.constant 0 : i32
    %c0_i32_1 = arith.constant 0 : i32
    return %arg0, %c0_i32, %c0_i32_0 : i32, i32, i32
  }
  func.func @transform_1(%arg0: i32) -> (i32, i32, i32) {
    %c0_i32 = arith.constant 0 : i32
    %c0_i32_0 = arith.constant 0 : i32
    %c0_i32_1 = arith.constant 0 : i32
    return %arg0, %c0_i32, %c0_i32_0 : i32, i32, i32
  }
}

</mosaic_0001>

<llo_original>
// kernel: maxpool2d.1
$region0: #{maxpool2d.1}
  #allocation0 [shape = 'u32[]', space=smem, size = 0x4, offset = 0x4, fixed_abs, tag = 'smem constant byte address 0x4 - core index']
  #allocation1 [shape = 'u32[72,128]{1,0:T(1,128)}', space=vmem, size = 0x9000, scoped, tag = 'internal scratch']
  #allocation2 [shape = 'f32[8,17,8]{2,1,0:T(8,128)}', space=vmem, size = 0x18000, scoped, tag = 'scratch operand']
  %s0 = inlined_call_operand.vmem [shape: f32[8,8,32], index: 0, kind: input, shape index: {}]
  %s1 = inlined_call_operand.hbm [shape: f32[8,8,8], index: 1, kind: output, shape index: {}]
  %s2 = sld [smem:[#allocation0]]
  $region14: #{maxpool2d.1} parent=0
    _
  %s4 = ssub.s32 1, %s2
  %s5 = scalar_select 0, %s4, %s2
  $region1: #{maxpool2d.1} parent=0
    #allocation3 [shape = 'u8[32768]{0}', space=vmem, size = 0x8000, scoped, tag = 'output window, operand 0, single buffered']
    #allocation4 [shape = 's32[1]{0}', space=sflag, size = 0x4, scoped, tag = 'scoped memory for maxpool2d.1']
    %6 = vsyncpa [#allocation4], 0
    // Predicated region
    $region2: #{maxpool2d.1} parent=1 // pred_check
      _
    $region3: #{maxpool2d.1} parent=1 // pred_check_branch
      %8 = sbr.rel (0) target = $region5
    $region4: #{maxpool2d.1} parent=1 // pred_region
      _
    $region5: #{maxpool2d.1} parent=1 // pred_fallthru
      _
    %v9 = vld [vmem:[%s0] sm:$0xff]
    %v10 = vld [vmem:[%s0 + $0x8] sm:$0xff]
    %v11 = vld [vmem:[%s0 + $0x10] sm:$0xff]
    %v12 = vld [vmem:[%s0 + $0x18] sm:$0xff]
    %v13 = vld [vmem:[%s0 + $0x20] sm:$0xff]
    %v14 = vld [vmem:[%s0 + $0x28] sm:$0xff]
    %v15 = vld [vmem:[%s0 + $0x30] sm:$0xff]
    %v16 = vld [vmem:[%s0 + $0x38] sm:$0xff]
    %25 = vrot.lane.b32.xlu0 %v9, 112
    %v26 = vpop.permute.xlu0 %25
    %27 = vrot.lane.b32.xlu0 %v10, 112
    %v28 = vpop.permute.xlu0 %27
    %29 = vrot.lane.b32.xlu0 %v11, 112
    %v30 = vpop.permute.xlu0 %29
    %31 = vrot.lane.b32.xlu0 %v12, 112
    %v32 = vpop.permute.xlu0 %31
    %33 = vrot.lane.b32.xlu0 %v13, 112
    %v34 = vpop.permute.xlu0 %33
    %35 = vrot.lane.b32.xlu0 %v14, 112
    %v36 = vpop.permute.xlu0 %35
    %37 = vrot.lane.b32.xlu0 %v15, 112
    %v38 = vpop.permute.xlu0 %37
    %39 = vrot.lane.b32.xlu0 %v16, 112
    %v40 = vpop.permute.xlu0 %39
    %v49 = vmax.f32 %v9, %v26
    %v50 = vmax.f32 %v10, %v28
    %v51 = vmax.f32 %v11, %v30
    %v52 = vmax.f32 %v12, %v32
    %v53 = vmax.f32 %v13, %v34
    %v54 = vmax.f32 %v14, %v36
    %v55 = vmax.f32 %v15, %v38
    %v56 = vmax.f32 %v16, %v40
    %v57 = vrot.slane %v9, 1
    %v58 = vrot.slane %v10, 1
    %v59 = vrot.slane %v11, 1
    %v60 = vrot.slane %v12, 1
    %v61 = vrot.slane %v13, 1
    %v62 = vrot.slane %v14, 1
    %v63 = vrot.slane %v15, 1
    %v64 = vrot.slane %v16, 1
    %v73 = vmax.f32 %v49, %v57
    %v74 = vmax.f32 %v50, %v58
    %v75 = vmax.f32 %v51, %v59
    %v76 = vmax.f32 %v52, %v60
    %v77 = vmax.f32 %v53, %v61
    %v78 = vmax.f32 %v54, %v62
    %v79 = vmax.f32 %v55, %v63
    %v80 = vmax.f32 %v56, %v64
    %81 = vxpose.xlu0.b32.start [1/16] %v73, 128
    %82 = vxpose.xlu0.b32.cont [2/16] 0.0, 128
    %83 = vxpose.xlu0.b32.cont [3/16] 0.0, 128
    %84 = vxpose.xlu0.b32.cont [4/16] 0.0, 128
    %85 = vxpose.xlu0.b32.cont [5/16] 0.0, 128
    %86 = vxpose.xlu0.b32.cont [6/16] 0.0, 128
    %87 = vxpose.xlu0.b32.cont [7/16] 0.0, 128
    %88 = vxpose.xlu0.b32.cont [8/16] 0.0, 128
    %89 = vxpose.xlu0.b32.cont [9/16] 0.0, 128
    %90 = vxpose.xlu0.b32.cont [10/16] 0.0, 128
    %91 = vxpose.xlu0.b32.cont [11/16] 0.0, 128
    %92 = vxpose.xlu0.b32.cont [12/16] 0.0, 128
    %93 = vxpose.xlu0.b32.cont [13/16] 0.0, 128
    %94 = vxpose.xlu0.b32.cont [14/16] 0.0, 128
    %95 = vxpose.xlu0.b32.cont [15/16] 0.0, 128
    %96 = vxpose.xlu0.b32.end [16/16] 0.0, 128
    %v97 = vpop.trf.xlu0
    %v98 = vpop.trf.xlu0
    %v99 = vpop.trf.xlu0
    %v100 = vpop.trf.xlu0
    %v101 = vpop.trf.xlu0
    %v102 = vpop.trf.xlu0
    %v103 = vpop.trf.xlu0
    %v104 = vpop.trf.xlu0
    %v105 = vpop.trf.xlu0
    %v106 = vpop.trf.xlu0
    %v107 = vpop.trf.xlu0
    %v108 = vpop.trf.xlu0
    %v109 = vpop.trf.xlu0
    %v110 = vpop.trf.xlu0
    %v111 = vpop.trf.xlu0
    %v112 = vpop.trf.xlu0
    %113 = vxpose.xlu0.b32.start [1/16] %v74, 128
    %114 = vxpose.xlu0.b32.cont [2/16] 0.0, 128
    %115 = vxpose.xlu0.b32.cont [3/16] 0.0, 128
    %116 = vxpose.xlu0.b32.cont [4/16] 0.0, 128
    %117 = vxpose.xlu0.b32.cont [5/16] 0.0, 128
    %118 = vxpose.xlu0.b32.cont [6/16] 0.0, 128
    %119 = vxpose.xlu0.b32.cont [7/16] 0.0, 128
    %120 = vxpose.xlu0.b32.cont [8/16] 0.0, 128
    %121 = vxpose.xlu0.b32.cont [9/16] 0.0, 128
    %122 = vxpose.xlu0.b32.cont [10/16] 0.0, 128
    %123 = vxpose.xlu0.b32.cont [11/16] 0.0, 128
    %124 = vxpose.xlu0.b32.cont [12/16] 0.0, 128
    %125 = vxpose.xlu0.b32.cont [13/16] 0.0, 128
    %126 = vxpose.xlu0.b32.cont [14/16] 0.0, 128
    %127 = vxpose.xlu0.b32.cont [15/16] 0.0, 128
    %128 = vxpose.xlu0.b32.end [16/16] 0.0, 128
    %v129 = vpop.trf.xlu0
    %v130 = vpop.trf.xlu0
    %v131 = vpop.trf.xlu0
    %v132 = vpop.trf.xlu0
    %v133 = vpop.trf.xlu0
    %v134 = vpop.trf.xlu0
    %v135 = vpop.trf.xlu0
    %v136 = vpop.trf.xlu0
    %v137 = vpop.trf.xlu0
    %v138 = vpop.trf.xlu0
    %v139 = vpop.trf.xlu0
    %v140 = vpop.trf.xlu0
    %v141 = vpop.trf.xlu0
    %v142 = vpop.trf.xlu0
    %v143 = vpop.trf.xlu0
    %v144 = vpop.trf.xlu0
    %145 = vxpose.xlu0.b32.start [1/16] %v75, 128
    %146 = vxpose.xlu0.b32.cont [2/16] 0.0, 128
    %147 = vxpose.xlu0.b32.cont [3/16] 0.0, 128
    %148 = vxpose.xlu0.b32.cont [4/16] 0.0, 128
    %149 = vxpose.xlu0.b32.cont [5/16] 0.0, 128
    %150 = vxpose.xlu0.b32.cont [6/16] 0.0, 128
    %151 = vxpose.xlu0.b32.cont [7/16] 0.0, 128
    %152 = vxpose.xlu0.b32.cont [8/16] 0.0, 128
    %153 = vxpose.xlu0.b32.cont [9/16] 0.0, 128
    %154 = vxpose.xlu0.b32.cont [10/16] 0.0, 128
    %155 = vxpose.xlu0.b32.cont [11/16] 0.0, 128
    %156 = vxpose.xlu0.b32.cont [12/16] 0.0, 128
    %157 = vxpose.xlu0.b32.cont [13/16] 0.0, 128
    %158 = vxpose.xlu0.b32.cont [14/16] 0.0, 128
    %159 = vxpose.xlu0.b32.cont [15/16] 0.0, 128
    %160 = vxpose.xlu0.b32.end [16/16] 0.0, 128
    %v161 = vpop.trf.xlu0
    %v162 = vpop.trf.xlu0
    %v163 = vpop.trf.xlu0
    %v164 = vpop.trf.xlu0
    %v165 = vpop.trf.xlu0
    %v166 = vpop.trf.xlu0
    %v167 = vpop.trf.xlu0
    %v168 = vpop.trf.xlu0
    %v169 = vpop.trf.xlu0
    %v170 = vpop.trf.xlu0
    %v171 = vpop.trf.xlu0
    %v172 = vpop.trf.xlu0
    %v173 = vpop.trf.xlu0
    %v174 = vpop.trf.xlu0
    %v175 = vpop.trf.xlu0
    %v176 = vpop.trf.xlu0
    %177 = vxpose.xlu0.b32.start [1/16] %v76, 128
    %178 = vxpose.xlu0.b32.cont [2/16] 0.0, 128
    %179 = vxpose.xlu0.b32.cont [3/16] 0.0, 128
    %180 = vxpose.xlu0.b32.cont [4/16] 0.0, 128
    %181 = vxpose.xlu0.b32.cont [5/16] 0.0, 128
    %182 = vxpose.xlu0.b32.cont [6/16] 0.0, 128
    %183 = vxpose.xlu0.b32.cont [7/16] 0.0, 128
    %184 = vxpose.xlu0.b32.cont [8/16] 0.0, 128
    %185 = vxpose.xlu0.b32.cont [9/16] 0.0, 128
    %186 = vxpose.xlu0.b32.cont [10/16] 0.0, 128
    %187 = vxpose.xlu0.b32.cont [11/16] 0.0, 128
    %188 = vxpose.xlu0.b32.cont [12/16] 0.0, 128
    %189 = vxpose.xlu0.b32.cont [13/16] 0.0, 128
    %190 = vxpose.xlu0.b32.cont [14/16] 0.0, 128
    %191 = vxpose.xlu0.b32.cont [15/16] 0.0, 128
    %192 = vxpose.xlu0.b32.end [16/16] 0.0, 128
    %v193 = vpop.trf.xlu0
    %v194 = vpop.trf.xlu0
    %v195 = vpop.trf.xlu0
    %v196 = vpop.trf.xlu0
    %v197 = vpop.trf.xlu0
    %v198 = vpop.trf.xlu0
    %v199 = vpop.trf.xlu0
    %v200 = vpop.trf.xlu0
    %v201 = vpop.trf.xlu0
    %v202 = vpop.trf.xlu0
    %v203 = vpop.trf.xlu0
    %v204 = vpop.trf.xlu0
    %v205 = vpop.trf.xlu0
    %v206 = vpop.trf.xlu0
    %v207 = vpop.trf.xlu0
    %v208 = vpop.trf.xlu0
    %209 = vxpose.xlu0.b32.start [1/16] %v77, 128
    %210 = vxpose.xlu0.b32.cont [2/16] 0.0, 128
    %211 = vxpose.xlu0.b32.cont [3/16] 0.0, 128
    %212 = vxpose.xlu0.b32.cont [4/16] 0.0, 128
    %213 = vxpose.xlu0.b32.cont [5/16] 0.0, 128
    %214 = vxpose.xlu0.b32.cont [6/16] 0.0, 128
    %215 = vxpose.xlu0.b32.cont [7/16] 0.0, 128
    %216 = vxpose.xlu0.b32.cont [8/16] 0.0, 128
    %217 = vxpose.xlu0.b32.cont [9/16] 0.0, 128
    %218 = vxpose.xlu0.b32.cont [10/16] 0.0, 128
    %219 = vxpose.xlu0.b32.cont [11/16] 0.0, 128
    %220 = vxpose.xlu0.b32.cont [12/16] 0.0, 128
    %221 = vxpose.xlu0.b32.cont [13/16] 0.0, 128
    %222 = vxpose.xlu0.b32.cont [14/16] 0.0, 128
    %223 = vxpose.xlu0.b32.cont [15/16] 0.0, 128
    %224 = vxpose.xlu0.b32.end [16/16] 0.0, 128
    %v225 = vpop.trf.xlu0
    %v226 = vpop.trf.xlu0
    %v227 = vpop.trf.xlu0
    %v228 = vpop.trf.xlu0
    %v229 = vpop.trf.xlu0
    %v230 = vpop.trf.xlu0
    %v231 = vpop.trf.xlu0
    %v232 = vpop.trf.xlu0
    %v233 = vpop.trf.xlu0
    %v234 = vpop.trf.xlu0
    %v235 = vpop.trf.xlu0
    %v236 = vpop.trf.xlu0
    %v237 = vpop.trf.xlu0
    %v238 = vpop.trf.xlu0
    %v239 = vpop.trf.xlu0
    %v240 = vpop.trf.xlu0
    %241 = vxpose.xlu0.b32.start [1/16] %v78, 128
    %242 = vxpose.xlu0.b32.cont [2/16] 0.0, 128
    %243 = vxpose.xlu0.b32.cont [3/16] 0.0, 128
    %244 = vxpose.xlu0.b32.cont [4/16] 0.0, 128
    %245 = vxpose.xlu0.b32.cont [5/16] 0.0, 128
    %246 = vxpose.xlu0.b32.cont [6/16] 0.0, 128
    %247 = vxpose.xlu0.b32.cont [7/16] 0.0, 128
    %248 = vxpose.xlu0.b32.cont [8/16] 0.0, 128
    %249 = vxpose.xlu0.b32.cont [9/16] 0.0, 128
    %250 = vxpose.xlu0.b32.cont [10/16] 0.0, 128
    %251 = vxpose.xlu0.b32.cont [11/16] 0.0, 128
    %252 = vxpose.xlu0.b32.cont [12/16] 0.0, 128
    %253 = vxpose.xlu0.b32.cont [13/16] 0.0, 128
    %254 = vxpose.xlu0.b32.cont [14/16] 0.0, 128
    %255 = vxpose.xlu0.b32.cont [15/16] 0.0, 128
    %256 = vxpose.xlu0.b32.end [16/16] 0.0, 128
    %v257 = vpop.trf.xlu0
    %v258 = vpop.trf.xlu0
    %v259 = vpop.trf.xlu0
    %v260 = vpop.trf.xlu0
    %v261 = vpop.trf.xlu0
    %v262 = vpop.trf.xlu0
    %v263 = vpop.trf.xlu0
    %v264 = vpop.trf.xlu0
    %v265 = vpop.trf.xlu0
    %v266 = vpop.trf.xlu0
    %v267 = vpop.trf.xlu0
    %v268 = vpop.trf.xlu0
    %v269 = vpop.trf.xlu0
    %v270 = vpop.trf.xlu0
    %v271 = vpop.trf.xlu0
    %v272 = vpop.trf.xlu0
    %273 = vxpose.xlu0.b32.start [1/16] %v79, 128
    %274 = vxpose.xlu0.b32.cont [2/16] 0.0, 128
    %275 = vxpose.xlu0.b32.cont [3/16] 0.0, 128
    %276 = vxpose.xlu0.b32.cont [4/16] 0.0, 128
    %277 = vxpose.xlu0.b32.cont [5/16] 0.0, 128
    %278 = vxpose.xlu0.b32.cont [6/16] 0.0, 128
    %279 = vxpose.xlu0.b32.cont [7/16] 0.0, 128
    %280 = vxpose.xlu0.b32.cont [8/16] 0.0, 128
    %281 = vxpose.xlu0.b32.cont [9/16] 0.0, 128
    %282 = vxpose.xlu0.b32.cont [10/16] 0.0, 128
    %283 = vxpose.xlu0.b32.cont [11/16] 0.0, 128
    %284 = vxpose.xlu0.b32.cont [12/16] 0.0, 128
    %285 = vxpose.xlu0.b32.cont [13/16] 0.0, 128
    %286 = vxpose.xlu0.b32.cont [14/16] 0.0, 128
    %287 = vxpose.xlu0.b32.cont [15/16] 0.0, 128
    %288 = vxpose.xlu0.b32.end [16/16] 0.0, 128
    %v289 = vpop.trf.xlu0
    %v290 = vpop.trf.xlu0
    %v291 = vpop.trf.xlu0
    %v292 = vpop.trf.xlu0
    %v293 = vpop.trf.xlu0
    %v294 = vpop.trf.xlu0
    %v295 = vpop.trf.xlu0
    %v296 = vpop.trf.xlu0
    %v297 = vpop.trf.xlu0
    %v298 = vpop.trf.xlu0
    %v299 = vpop.trf.xlu0
    %v300 = vpop.trf.xlu0
    %v301 = vpop.trf.xlu0
    %v302 = vpop.trf.xlu0
    %v303 = vpop.trf.xlu0
    %v304 = vpop.trf.xlu0
    %305 = vxpose.xlu0.b32.start [1/16] %v80, 128
    %306 = vxpose.xlu0.b32.cont [2/16] 0.0, 128
    %307 = vxpose.xlu0.b32.cont [3/16] 0.0, 128
    %308 = vxpose.xlu0.b32.cont [4/16] 0.0, 128
    %309 = vxpose.xlu0.b32.cont [5/16] 0.0, 128
    %310 = vxpose.xlu0.b32.cont [6/16] 0.0, 128
    %311 = vxpose.xlu0.b32.cont [7/16] 0.0, 128
    %312 = vxpose.xlu0.b32.cont [8/16] 0.0, 128
    %313 = vxpose.xlu0.b32.cont [9/16] 0.0, 128
    %314 = vxpose.xlu0.b32.cont [10/16] 0.0, 128
    %315 = vxpose.xlu0.b32.cont [11/16] 0.0, 128
    %316 = vxpose.xlu0.b32.cont [12/16] 0.0, 128
    %317 = vxpose.xlu0.b32.cont [13/16] 0.0, 128
    %318 = vxpose.xlu0.b32.cont [14/16] 0.0, 128
    %319 = vxpose.xlu0.b32.cont [15/16] 0.0, 128
    %320 = vxpose.xlu0.b32.end [16/16] 0.0, 128
    %v321 = vpop.trf.xlu0
    %v322 = vpop.trf.xlu0
    %v323 = vpop.trf.xlu0
    %v324 = vpop.trf.xlu0
    %v325 = vpop.trf.xlu0
    %v326 = vpop.trf.xlu0
    %v327 = vpop.trf.xlu0
    %v328 = vpop.trf.xlu0
    %v329 = vpop.trf.xlu0
    %v330 = vpop.trf.xlu0
    %v331 = vpop.trf.xlu0
    %v332 = vpop.trf.xlu0
    %v333 = vpop.trf.xlu0
    %v334 = vpop.trf.xlu0
    %v335 = vpop.trf.xlu0
    %v336 = vpop.trf.xlu0
    %vm337 = vcmask 56320
    %338 = vst.msk [vmem:[#allocation2] sm:$0xff] %vm337, %v97
    %339 = vst.msk [vmem:[#allocation2 + $0x8] sm:$0xff] %vm337, %v98
    %340 = vst.msk [vmem:[#allocation2 + $0x18] sm:$0xff] %vm337, %v129
    %341 = vst.msk [vmem:[#allocation2 + $0x20] sm:$0xff] %vm337, %v130
    %342 = vst.msk [vmem:[#allocation2 + $0x30] sm:$0xff] %vm337, %v161
    %343 = vst.msk [vmem:[#allocation2 + $0x38] sm:$0xff] %vm337, %v162
    %344 = vst.msk [vmem:[#allocation2 + $0x48] sm:$0xff] %vm337, %v193
    %345 = vst.msk [vmem:[#allocation2 + $0x50] sm:$0xff] %vm337, %v194
    %346 = vst.msk [vmem:[#allocation2 + $0x60] sm:$0xff] %vm337, %v225
    %347 = vst.msk [vmem:[#allocation2 + $0x68] sm:$0xff] %vm337, %v226
    %348 = vst.msk [vmem:[#allocation2 + $0x78] sm:$0xff] %vm337, %v257
    %349 = vst.msk [vmem:[#allocation2 + $0x80] sm:$0xff] %vm337, %v258
    %350 = vst.msk [vmem:[#allocation2 + $0x90] sm:$0xff] %vm337, %v289
    %351 = vst.msk [vmem:[#allocation2 + $0x98] sm:$0xff] %vm337, %v290
    %352 = vst.msk [vmem:[#allocation2 + $0xa8] sm:$0xff] %vm337, %v321
    %353 = vst.msk [vmem:[#allocation2 + $0xb0] sm:$0xff] %vm337, %v322
    %v362 = vrot.slane %v49, 7
    %v363 = vrot.slane %v50, 7
    %v364 = vrot.slane %v51, 7
    %v365 = vrot.slane %v52, 7
    %v366 = vrot.slane %v53, 7
    %v367 = vrot.slane %v54, 7
    %v368 = vrot.slane %v55, 7
    %v369 = vrot.slane %v56, 7
    %378 = vxpose.xlu0.b32.start [1/16] %v362, 128
    %379 = vxpose.xlu0.b32.cont [2/16] 0.0, 128
    %380 = vxpose.xlu0.b32.cont [3/16] 0.0, 128
    %381 = vxpose.xlu0.b32.cont [4/16] 0.0, 128
    %382 = vxpose.xlu0.b32.cont [5/16] 0.0, 128
    %383 = vxpose.xlu0.b32.cont [6/16] 0.0, 128
    %384 = vxpose.xlu0.b32.cont [7/16] 0.0, 128
    %385 = vxpose.xlu0.b32.cont [8/16] 0.0, 128
    %386 = vxpose.xlu0.b32.cont [9/16] 0.0, 128
    %387 = vxpose.xlu0.b32.cont [10/16] 0.0, 128
    %388 = vxpose.xlu0.b32.cont [11/16] 0.0, 128
    %389 = vxpose.xlu0.b32.cont [12/16] 0.0, 128
    %390 = vxpose.xlu0.b32.cont [13/16] 0.0, 128
    %391 = vxpose.xlu0.b32.cont [14/16] 0.0, 128
    %392 = vxpose.xlu0.b32.cont [15/16] 0.0, 128
    %393 = vxpose.xlu0.b32.end [16/16] 0.0, 128
    %v394 = vpop.trf.xlu0
    %v395 = vpop.trf.xlu0
    %v396 = vpop.trf.xlu0
    %v397 = vpop.trf.xlu0
    %v398 = vpop.trf.xlu0
    %v399 = vpop.trf.xlu0
    %v400 = vpop.trf.xlu0
    %v401 = vpop.trf.xlu0
    %v402 = vpop.trf.xlu0
    %v403 = vpop.trf.xlu0
    %v404 = vpop.trf.xlu0
    %v405 = vpop.trf.xlu0
    %v406 = vpop.trf.xlu0
    %v407 = vpop.trf.xlu0
    %v408 = vpop.trf.xlu0
    %v409 = vpop.trf.xlu0
    %410 = vxpose.xlu0.b32.start [1/16] %v363, 128
    %411 = vxpose.xlu0.b32.cont [2/16] 0.0, 128
    %412 = vxpose.xlu0.b32.cont [3/16] 0.0, 128
    %413 = vxpose.xlu0.b32.cont [4/16] 0.0, 128
    %414 = vxpose.xlu0.b32.cont [5/16] 0.0, 128
    %415 = vxpose.xlu0.b32.cont [6/16] 0.0, 128
    %416 = vxpose.xlu0.b32.cont [7/16] 0.0, 128
    %417 = vxpose.xlu0.b32.cont [8/16] 0.0, 128
    %418 = vxpose.xlu0.b32.cont [9/16] 0.0, 128
    %419 = vxpose.xlu0.b32.cont [10/16] 0.0, 128
    %420 = vxpose.xlu0.b32.cont [11/16] 0.0, 128
    %421 = vxpose.xlu0.b32.cont [12/16] 0.0, 128
    %422 = vxpose.xlu0.b32.cont [13/16] 0.0, 128
    %423 = vxpose.xlu0.b32.cont [14/16] 0.0, 128
    %424 = vxpose.xlu0.b32.cont [15/16] 0.0, 128
    %425 = vxpose.xlu0.b32.end [16/16] 0.0, 128
    %v426 = vpop.trf.xlu0
    %v427 = vpop.trf.xlu0
    %v428 = vpop.trf.xlu0
    %v429 = vpop.trf.xlu0
    %v430 = vpop.trf.xlu0
    %v431 = vpop.trf.xlu0
    %v432 = vpop.trf.xlu0
    %v433 = vpop.trf.xlu0
    %v434 = vpop.trf.xlu0
    %v435 = vpop.trf.xlu0
    %v436 = vpop.trf.xlu0
    %v437 = vpop.trf.xlu0
    %v438 = vpop.trf.xlu0
    %v439 = vpop.trf.xlu0
    %v440 = vpop.trf.xlu0
    %v441 = vpop.trf.xlu0
    %442 = vxpose.xlu0.b32.start [1/16] %v364, 128
    %443 = vxpose.xlu0.b32.cont [2/16] 0.0, 128
    %444 = vxpose.xlu0.b32.cont [3/16] 0.0, 128
    %445 = vxpose.xlu0.b32.cont [4/16] 0.0, 128
    %446 = vxpose.xlu0.b32.cont [5/16] 0.0, 128
    %447 = vxpose.xlu0.b32.cont [6/16] 0.0, 128
    %448 = vxpose.xlu0.b32.cont [7/16] 0.0, 128
    %449 = vxpose.xlu0.b32.cont [8/16] 0.0, 128
    %450 = vxpose.xlu0.b32.cont [9/16] 0.0, 128
    %451 = vxpose.xlu0.b32.cont [10/16] 0.0, 128
    %452 = vxpose.xlu0.b32.cont [11/16] 0.0, 128
    %453 = vxpose.xlu0.b32.cont [12/16] 0.0, 128
    %454 = vxpose.xlu0.b32.cont [13/16] 0.0, 128
    %455 = vxpose.xlu0.b32.cont [14/16] 0.0, 128
    %456 = vxpose.xlu0.b32.cont [15/16] 0.0, 128
    %457 = vxpose.xlu0.b32.end [16/16] 0.0, 128
    %v458 = vpop.trf.xlu0
    %v459 = vpop.trf.xlu0
    %v460 = vpop.trf.xlu0
    %v461 = vpop.trf.xlu0
    %v462 = vpop.trf.xlu0
    %v463 = vpop.trf.xlu0
    %v464 = vpop.trf.xlu0
    %v465 = vpop.trf.xlu0
    %v466 = vpop.trf.xlu0
    %v467 = vpop.trf.xlu0
    %v468 = vpop.trf.xlu0
    %v469 = vpop.trf.xlu0
    %v470 = vpop.trf.xlu0
    %v471 = vpop.trf.xlu0
    %v472 = vpop.trf.xlu0
    %v473 = vpop.trf.xlu0
    %474 = vxpose.xlu0.b32.start [1/16] %v365, 128
    %475 = vxpose.xlu0.b32.cont [2/16] 0.0, 128
    %476 = vxpose.xlu0.b32.cont [3/16] 0.0, 128
    %477 = vxpose.xlu0.b32.cont [4/16] 0.0, 128
    %478 = vxpose.xlu0.b32.cont [5/16] 0.0, 128
    %479 = vxpose.xlu0.b32.cont [6/16] 0.0, 128
    %480 = vxpose.xlu0.b32.cont [7/16] 0.0, 128
    %481 = vxpose.xlu0.b32.cont [8/16] 0.0, 128
    %482 = vxpose.xlu0.b32.cont [9/16] 0.0, 128
    %483 = vxpose.xlu0.b32.cont [10/16] 0.0, 128
    %484 = vxpose.xlu0.b32.cont [11/16] 0.0, 128
    %485 = vxpose.xlu0.b32.cont [12/16] 0.0, 128
    %486 = vxpose.xlu0.b32.cont [13/16] 0.0, 128
    %487 = vxpose.xlu0.b32.cont [14/16] 0.0, 128
    %488 = vxpose.xlu0.b32.cont [15/16] 0.0, 128
    %489 = vxpose.xlu0.b32.end [16/16] 0.0, 128
    %v490 = vpop.trf.xlu0
    %v491 = vpop.trf.xlu0
    %v492 = vpop.trf.xlu0
    %v493 = vpop.trf.xlu0
    %v494 = vpop.trf.xlu0
    %v495 = vpop.trf.xlu0
    %v496 = vpop.trf.xlu0
    %v497 = vpop.trf.xlu0
    %v498 = vpop.trf.xlu0
    %v499 = vpop.trf.xlu0
    %v500 = vpop.trf.xlu0
    %v501 = vpop.trf.xlu0
    %v502 = vpop.trf.xlu0
    %v503 = vpop.trf.xlu0
    %v504 = vpop.trf.xlu0
    %v505 = vpop.trf.xlu0
    %506 = vxpose.xlu0.b32.start [1/16] %v366, 128
    %507 = vxpose.xlu0.b32.cont [2/16] 0.0, 128
    %508 = vxpose.xlu0.b32.cont [3/16] 0.0, 128
    %509 = vxpose.xlu0.b32.cont [4/16] 0.0, 128
    %510 = vxpose.xlu0.b32.cont [5/16] 0.0, 128
    %511 = vxpose.xlu0.b32.cont [6/16] 0.0, 128
    %512 = vxpose.xlu0.b32.cont [7/16] 0.0, 128
    %513 = vxpose.xlu0.b32.cont [8/16] 0.0, 128
    %514 = vxpose.xlu0.b32.cont [9/16] 0.0, 128
    %515 = vxpose.xlu0.b32.cont [10/16] 0.0, 128
    %516 = vxpose.xlu0.b32.cont [11/16] 0.0, 128
    %517 = vxpose.xlu0.b32.cont [12/16] 0.0, 128
    %518 = vxpose.xlu0.b32.cont [13/16] 0.0, 128
    %519 = vxpose.xlu0.b32.cont [14/16] 0.0, 128
    %520 = vxpose.xlu0.b32.cont [15/16] 0.0, 128
    %521 = vxpose.xlu0.b32.end [16/16] 0.0, 128
    %v522 = vpop.trf.xlu0
    %v523 = vpop.trf.xlu0
    %v524 = vpop.trf.xlu0
    %v525 = vpop.trf.xlu0
    %v526 = vpop.trf.xlu0
    %v527 = vpop.trf.xlu0
    %v528 = vpop.trf.xlu0
    %v529 = vpop.trf.xlu0
    %v530 = vpop.trf.xlu0
    %v531 = vpop.trf.xlu0
    %v532 = vpop.trf.xlu0
    %v533 = vpop.trf.xlu0
    %v534 = vpop.trf.xlu0
    %v535 = vpop.trf.xlu0
    %v536 = vpop.trf.xlu0
    %v537 = vpop.trf.xlu0
    %538 = vxpose.xlu0.b32.start [1/16] %v367, 128
    %539 = vxpose.xlu0.b32.cont [2/16] 0.0, 128
    %540 = vxpose.xlu0.b32.cont [3/16] 0.0, 128
    %541 = vxpose.xlu0.b32.cont [4/16] 0.0, 128
    %542 = vxpose.xlu0.b32.cont [5/16] 0.0, 128
    %543 = vxpose.xlu0.b32.cont [6/16] 0.0, 128
    %544 = vxpose.xlu0.b32.cont [7/16] 0.0, 128
    %545 = vxpose.xlu0.b32.cont [8/16] 0.0, 128
    %546 = vxpose.xlu0.b32.cont [9/16] 0.0, 128
    %547 = vxpose.xlu0.b32.cont [10/16] 0.0, 128
    %548 = vxpose.xlu0.b32.cont [11/16] 0.0, 128
    %549 = vxpose.xlu0.b32.cont [12/16] 0.0, 128
    %550 = vxpose.xlu0.b32.cont [13/16] 0.0, 128
    %551 = vxpose.xlu0.b32.cont [14/16] 0.0, 128
    %552 = vxpose.xlu0.b32.cont [15/16] 0.0, 128
    %553 = vxpose.xlu0.b32.end [16/16] 0.0, 128
    %v554 = vpop.trf.xlu0
    %v555 = vpop.trf.xlu0
    %v556 = vpop.trf.xlu0
    %v557 = vpop.trf.xlu0
    %v558 = vpop.trf.xlu0
    %v559 = vpop.trf.xlu0
    %v560 = vpop.trf.xlu0
    %v561 = vpop.trf.xlu0
    %v562 = vpop.trf.xlu0
    %v563 = vpop.trf.xlu0
    %v564 = vpop.trf.xlu0
    %v565 = vpop.trf.xlu0
    %v566 = vpop.trf.xlu0
    %v567 = vpop.trf.xlu0
    %v568 = vpop.trf.xlu0
    %v569 = vpop.trf.xlu0
    %570 = vxpose.xlu0.b32.start [1/16] %v368, 128
    %571 = vxpose.xlu0.b32.cont [2/16] 0.0, 128
    %572 = vxpose.xlu0.b32.cont [3/16] 0.0, 128
    %573 = vxpose.xlu0.b32.cont [4/16] 0.0, 128
    %574 = vxpose.xlu0.b32.cont [5/16] 0.0, 128
    %575 = vxpose.xlu0.b32.cont [6/16] 0.0, 128
    %576 = vxpose.xlu0.b32.cont [7/16] 0.0, 128
    %577 = vxpose.xlu0.b32.cont [8/16] 0.0, 128
    %578 = vxpose.xlu0.b32.cont [9/16] 0.0, 128
    %579 = vxpose.xlu0.b32.cont [10/16] 0.0, 128
    %580 = vxpose.xlu0.b32.cont [11/16] 0.0, 128
    %581 = vxpose.xlu0.b32.cont [12/16] 0.0, 128
    %582 = vxpose.xlu0.b32.cont [13/16] 0.0, 128
    %583 = vxpose.xlu0.b32.cont [14/16] 0.0, 128
    %584 = vxpose.xlu0.b32.cont [15/16] 0.0, 128
    %585 = vxpose.xlu0.b32.end [16/16] 0.0, 128
    %v586 = vpop.trf.xlu0
    %v587 = vpop.trf.xlu0
    %v588 = vpop.trf.xlu0
    %v589 = vpop.trf.xlu0
    %v590 = vpop.trf.xlu0
    %v591 = vpop.trf.xlu0
    %v592 = vpop.trf.xlu0
    %v593 = vpop.trf.xlu0
    %v594 = vpop.trf.xlu0
    %v595 = vpop.trf.xlu0
    %v596 = vpop.trf.xlu0
    %v597 = vpop.trf.xlu0
    %v598 = vpop.trf.xlu0
    %v599 = vpop.trf.xlu0
    %v600 = vpop.trf.xlu0
    %v601 = vpop.trf.xlu0
    %602 = vxpose.xlu0.b32.start [1/16] %v369, 128
    %603 = vxpose.xlu0.b32.cont [2/16] 0.0, 128
    %604 = vxpose.xlu0.b32.cont [3/16] 0.0, 128
    %605 = vxpose.xlu0.b32.cont [4/16] 0.0, 128
    %606 = vxpose.xlu0.b32.cont [5/16] 0.0, 128
    %607 = vxpose.xlu0.b32.cont [6/16] 0.0, 128
    %608 = vxpose.xlu0.b32.cont [7/16] 0.0, 128
    %609 = vxpose.xlu0.b32.cont [8/16] 0.0, 128
    %610 = vxpose.xlu0.b32.cont [9/16] 0.0, 128
    %611 = vxpose.xlu0.b32.cont [10/16] 0.0, 128
    %612 = vxpose.xlu0.b32.cont [11/16] 0.0, 128
    %613 = vxpose.xlu0.b32.cont [12/16] 0.0, 128
    %614 = vxpose.xlu0.b32.cont [13/16] 0.0, 128
    %615 = vxpose.xlu0.b32.cont [14/16] 0.0, 128
    %616 = vxpose.xlu0.b32.cont [15/16] 0.0, 128
    %617 = vxpose.xlu0.b32.end [16/16] 0.0, 128
    %v618 = vpop.trf.xlu0
    %v619 = vpop.trf.xlu0
    %v620 = vpop.trf.xlu0
    %v621 = vpop.trf.xlu0
    %v622 = vpop.trf.xlu0
    %v623 = vpop.trf.xlu0
    %v624 = vpop.trf.xlu0
    %v625 = vpop.trf.xlu0
    %v626 = vpop.trf.xlu0
    %v627 = vpop.trf.xlu0
    %v628 = vpop.trf.xlu0
    %v629 = vpop.trf.xlu0
    %v630 = vpop.trf.xlu0
    %v631 = vpop.trf.xlu0
    %v632 = vpop.trf.xlu0
    %v633 = vpop.trf.xlu0
    %650 = vrot.lane.b32.xlu0 %v394, 7
    %v651 = vpop.permute.xlu0 %650
    %652 = vrot.lane.b32.xlu0 %v395, 7
    %v653 = vpop.permute.xlu0 %652
    %654 = vrot.lane.b32.xlu0 %v426, 7
    %v655 = vpop.permute.xlu0 %654
    %656 = vrot.lane.b32.xlu0 %v427, 7
    %v657 = vpop.permute.xlu0 %656
    %658 = vrot.lane.b32.xlu0 %v458, 7
    %v659 = vpop.permute.xlu0 %658
    %660 = vrot.lane.b32.xlu0 %v459, 7
    %v661 = vpop.permute.xlu0 %660
    %662 = vrot.lane.b32.xlu0 %v490, 7
    %v663 = vpop.permute.xlu0 %662
    %664 = vrot.lane.b32.xlu0 %v491, 7
    %v665 = vpop.permute.xlu0 %664
    %666 = vrot.lane.b32.xlu0 %v522, 7
    %v667 = vpop.permute.xlu0 %666
    %668 = vrot.lane.b32.xlu0 %v523, 7
    %v669 = vpop.permute.xlu0 %668
    %670 = vrot.lane.b32.xlu0 %v554, 7
    %v671 = vpop.permute.xlu0 %670
    %672 = vrot.lane.b32.xlu0 %v555, 7
    %v673 = vpop.permute.xlu0 %672
    %674 = vrot.lane.b32.xlu0 %v586, 7
    %v675 = vpop.permute.xlu0 %674
    %676 = vrot.lane.b32.xlu0 %v587, 7
    %v677 = vpop.permute.xlu0 %676
    %678 = vrot.lane.b32.xlu0 %v618, 7
    %v679 = vpop.permute.xlu0 %678
    %680 = vrot.lane.b32.xlu0 %v619, 7
    %v681 = vpop.permute.xlu0 %680
    %vm698 = vcmask 64568
    %699 = vst.msk [vmem:[#allocation2] sm:$0xff] %vm698, %v651
    %700 = vst.msk [vmem:[#allocation2 + $0x8] sm:$0xff] %vm698, %v653
    %701 = vst.msk [vmem:[#allocation2 + $0x18] sm:$0xff] %vm698, %v655
    %702 = vst.msk [vmem:[#allocation2 + $0x20] sm:$0xff] %vm698, %v657
    %703 = vst.msk [vmem:[#allocation2 + $0x30] sm:$0xff] %vm698, %v659
    %704 = vst.msk [vmem:[#allocation2 + $0x38] sm:$0xff] %vm698, %v661
    %705 = vst.msk [vmem:[#allocation2 + $0x48] sm:$0xff] %vm698, %v663
    %706 = vst.msk [vmem:[#allocation2 + $0x50] sm:$0xff] %vm698, %v665
    %707 = vst.msk [vmem:[#allocation2 + $0x60] sm:$0xff] %vm698, %v667
    %708 = vst.msk [vmem:[#allocation2 + $0x68] sm:$0xff] %vm698, %v669
    %709 = vst.msk [vmem:[#allocation2 + $0x78] sm:$0xff] %vm698, %v671
    %710 = vst.msk [vmem:[#allocation2 + $0x80] sm:$0xff] %vm698, %v673
    %711 = vst.msk [vmem:[#allocation2 + $0x90] sm:$0xff] %vm698, %v675
    %712 = vst.msk [vmem:[#allocation2 + $0x98] sm:$0xff] %vm698, %v677
    %713 = vst.msk [vmem:[#allocation2 + $0xa8] sm:$0xff] %vm698, %v679
    %714 = vst.msk [vmem:[#allocation2 + $0xb0] sm:$0xff] %vm698, %v681
    %v715 = vld [vmem:[#allocation2 + $0xf] sm:$0x1]
    %v716 = vld [vmem:[#allocation2 + $0x27] sm:$0x1]
    %v717 = vld [vmem:[#allocation2 + $0x3f] sm:$0x1]
    %v718 = vld [vmem:[#allocation2 + $0x57] sm:$0x1]
    %v719 = vld [vmem:[#allocation2 + $0x6f] sm:$0x1]
    %v720 = vld [vmem:[#allocation2 + $0x87] sm:$0x1]
    %v721 = vld [vmem:[#allocation2 + $0x9f] sm:$0x1]
    %v722 = vld [vmem:[#allocation2 + $0xb7] sm:$0x1]
    %vm723 = vcmask 57344
    %724 = vst.msk [vmem:[#allocation2 + $0x10] sm:$0x1] %vm723, %v715
    %725 = vst.msk [vmem:[#allocation2 + $0x28] sm:$0x1] %vm723, %v716
    %726 = vst.msk [vmem:[#allocation2 + $0x40] sm:$0x1] %vm723, %v717
    %727 = vst.msk [vmem:[#allocation2 + $0x58] sm:$0x1] %vm723, %v718
    %728 = vst.msk [vmem:[#allocation2 + $0x70] sm:$0x1] %vm723, %v719
    %729 = vst.msk [vmem:[#allocation2 + $0x88] sm:$0x1] %vm723, %v720
    %730 = vst.msk [vmem:[#allocation2 + $0xa0] sm:$0x1] %vm723, %v721
    %731 = vst.msk [vmem:[#allocation2 + $0xb8] sm:$0x1] %vm723, %v722
    %v732 = vld [vmem:[#allocation2] ss:$2 sm:$0xff]
    %s733 = scalar_lea.vmem [#allocation2], 24
    %v734 = vld [vmem:[%s733] ss:$2 sm:$0xff]
    %s735 = scalar_lea.vmem [#allocation2], 48
    %v736 = vld [vmem:[%s735] ss:$2 sm:$0xff]
    %s737 = scalar_lea.vmem [#allocation2], 72
    %v738 = vld [vmem:[%s737] ss:$2 sm:$0xff]
    %s739 = scalar_lea.vmem [#allocation2], 96
    %v740 = vld [vmem:[%s739] ss:$2 sm:$0xff]
    %s741 = scalar_lea.vmem [#allocation2], 120
    %v742 = vld [vmem:[%s741] ss:$2 sm:$0xff]
    %s743 = scalar_lea.vmem [#allocation2], 144
    %v744 = vld [vmem:[%s743] ss:$2 sm:$0xff]
    %s745 = scalar_lea.vmem [#allocation2], 168
    %v746 = vld [vmem:[%s745] ss:$2 sm:$0xff]
    %s747 = scalar_lea.vmem [#allocation2], 1
    %v748 = vld [vmem:[%s747] ss:$2 sm:$0xff]
    %s749 = scalar_lea.vmem [#allocation2], 25
    %v750 = vld [vmem:[%s749] ss:$2 sm:$0xff]
    %s751 = scalar_lea.vmem [#allocation2], 49
    %v752 = vld [vmem:[%s751] ss:$2 sm:$0xff]
    %s753 = scalar_lea.vmem [#allocation2], 73
    %v754 = vld [vmem:[%s753] ss:$2 sm:$0xff]
    %s755 = scalar_lea.vmem [#allocation2], 97
    %v756 = vld [vmem:[%s755] ss:$2 sm:$0xff]
    %s757 = scalar_lea.vmem [#allocation2], 121
    %v758 = vld [vmem:[%s757] ss:$2 sm:$0xff]
    %s759 = scalar_lea.vmem [#allocation2], 145
    %v760 = vld [vmem:[%s759] ss:$2 sm:$0xff]
    %s761 = scalar_lea.vmem [#allocation2], 169
    %v762 = vld [vmem:[%s761] ss:$2 sm:$0xff]
    %s763 = scalar_lea.vmem [#allocation2], 2
    %v764 = vld [vmem:[%s763] ss:$2 sm:$0xff]
    %s765 = scalar_lea.vmem [#allocation2], 26
    %v766 = vld [vmem:[%s765] ss:$2 sm:$0xff]
    %s767 = scalar_lea.vmem [#allocation2], 50
    %v768 = vld [vmem:[%s767] ss:$2 sm:$0xff]
    %s769 = scalar_lea.vmem [#allocation2], 74
    %v770 = vld [vmem:[%s769] ss:$2 sm:$0xff]
    %s771 = scalar_lea.vmem [#allocation2], 98
    %v772 = vld [vmem:[%s771] ss:$2 sm:$0xff]
    %s773 = scalar_lea.vmem [#allocation2], 122
    %v774 = vld [vmem:[%s773] ss:$2 sm:$0xff]
    %s775 = scalar_lea.vmem [#allocation2], 146
    %v776 = vld [vmem:[%s775] ss:$2 sm:$0xff]
    %s777 = scalar_lea.vmem [#allocation2], 170
    %v778 = vld [vmem:[%s777] ss:$2 sm:$0xff]
    %v779 = vmax.f32 %v732, %v748
    %v780 = vmax.f32 %v734, %v750
    %v781 = vmax.f32 %v736, %v752
    %v782 = vmax.f32 %v738, %v754
    %v783 = vmax.f32 %v740, %v756
    %v784 = vmax.f32 %v742, %v758
    %v785 = vmax.f32 %v744, %v760
    %v786 = vmax.f32 %v746, %v762
    %v787 = vmax.f32 %v779, %v764
    %v788 = vmax.f32 %v780, %v766
    %v789 = vmax.f32 %v781, %v768
    %v790 = vmax.f32 %v782, %v770
    %v791 = vmax.f32 %v783, %v772
    %v792 = vmax.f32 %v784, %v774
    %v793 = vmax.f32 %v785, %v776
    %v794 = vmax.f32 %v786, %v778
    %795 = vxpose.xlu0.b32.start [1/16] %v787, 128
    %796 = vxpose.xlu0.b32.cont [2/16] 0.0, 128
    %797 = vxpose.xlu0.b32.cont [3/16] 0.0, 128
    %798 = vxpose.xlu0.b32.cont [4/16] 0.0, 128
    %799 = vxpose.xlu0.b32.cont [5/16] 0.0, 128
    %800 = vxpose.xlu0.b32.cont [6/16] 0.0, 128
    %801 = vxpose.xlu0.b32.cont [7/16] 0.0, 128
    %802 = vxpose.xlu0.b32.cont [8/16] 0.0, 128
    %803 = vxpose.xlu0.b32.cont [9/16] 0.0, 128
    %804 = vxpose.xlu0.b32.cont [10/16] 0.0, 128
    %805 = vxpose.xlu0.b32.cont [11/16] 0.0, 128
    %806 = vxpose.xlu0.b32.cont [12/16] 0.0, 128
    %807 = vxpose.xlu0.b32.cont [13/16] 0.0, 128
    %808 = vxpose.xlu0.b32.cont [14/16] 0.0, 128
    %809 = vxpose.xlu0.b32.cont [15/16] 0.0, 128
    %810 = vxpose.xlu0.b32.end [16/16] 0.0, 128
    %v811 = vpop.trf.xlu0
    %v812 = vpop.trf.xlu0
    %v813 = vpop.trf.xlu0
    %v814 = vpop.trf.xlu0
    %v815 = vpop.trf.xlu0
    %v816 = vpop.trf.xlu0
    %v817 = vpop.trf.xlu0
    %v818 = vpop.trf.xlu0
    %v819 = vpop.trf.xlu0
    %v820 = vpop.trf.xlu0
    %v821 = vpop.trf.xlu0
    %v822 = vpop.trf.xlu0
    %v823 = vpop.trf.xlu0
    %v824 = vpop.trf.xlu0
    %v825 = vpop.trf.xlu0
    %v826 = vpop.trf.xlu0
    %827 = vxpose.xlu0.b32.start [1/16] %v788, 128
    %828 = vxpose.xlu0.b32.cont [2/16] 0.0, 128
    %829 = vxpose.xlu0.b32.cont [3/16] 0.0, 128
    %830 = vxpose.xlu0.b32.cont [4/16] 0.0, 128
    %831 = vxpose.xlu0.b32.cont [5/16] 0.0, 128
    %832 = vxpose.xlu0.b32.cont [6/16] 0.0, 128
    %833 = vxpose.xlu0.b32.cont [7/16] 0.0, 128
    %834 = vxpose.xlu0.b32.cont [8/16] 0.0, 128
    %835 = vxpose.xlu0.b32.cont [9/16] 0.0, 128
    %836 = vxpose.xlu0.b32.cont [10/16] 0.0, 128
    %837 = vxpose.xlu0.b32.cont [11/16] 0.0, 128
    %838 = vxpose.xlu0.b32.cont [12/16] 0.0, 128
    %839 = vxpose.xlu0.b32.cont [13/16] 0.0, 128
    %840 = vxpose.xlu0.b32.cont [14/16] 0.0, 128
    %841 = vxpose.xlu0.b32.cont [15/16] 0.0, 128
    %842 = vxpose.xlu0.b32.end [16/16] 0.0, 128
    %v843 = vpop.trf.xlu0
    %v844 = vpop.trf.xlu0
    %v845 = vpop.trf.xlu0
    %v846 = vpop.trf.xlu0
    %v847 = vpop.trf.xlu0
    %v848 = vpop.trf.xlu0
    %v849 = vpop.trf.xlu0
    %v850 = vpop.trf.xlu0
    %v851 = vpop.trf.xlu0
    %v852 = vpop.trf.xlu0
    %v853 = vpop.trf.xlu0
    %v854 = vpop.trf.xlu0
    %v855 = vpop.trf.xlu0
    %v856 = vpop.trf.xlu0
    %v857 = vpop.trf.xlu0
    %v858 = vpop.trf.xlu0
    %859 = vxpose.xlu0.b32.start [1/16] %v789, 128
    %860 = vxpose.xlu0.b32.cont [2/16] 0.0, 128
    %861 = vxpose.xlu0.b32.cont [3/16] 0.0, 128
    %862 = vxpose.xlu0.b32.cont [4/16] 0.0, 128
    %863 = vxpose.xlu0.b32.cont [5/16] 0.0, 128
    %864 = vxpose.xlu0.b32.cont [6/16] 0.0, 128
    %865 = vxpose.xlu0.b32.cont [7/16] 0.0, 128
    %866 = vxpose.xlu0.b32.cont [8/16] 0.0, 128
    %867 = vxpose.xlu0.b32.cont [9/16] 0.0, 128
    %868 = vxpose.xlu0.b32.cont [10/16] 0.0, 128
    %869 = vxpose.xlu0.b32.cont [11/16] 0.0, 128
    %870 = vxpose.xlu0.b32.cont [12/16] 0.0, 128
    %871 = vxpose.xlu0.b32.cont [13/16] 0.0, 128
    %872 = vxpose.xlu0.b32.cont [14/16] 0.0, 128
    %873 = vxpose.xlu0.b32.cont [15/16] 0.0, 128
    %874 = vxpose.xlu0.b32.end [16/16] 0.0, 128
    %v875 = vpop.trf.xlu0
    %v876 = vpop.trf.xlu0
    %v877 = vpop.trf.xlu0
    %v878 = vpop.trf.xlu0
    %v879 = vpop.trf.xlu0
    %v880 = vpop.trf.xlu0
    %v881 = vpop.trf.xlu0
    %v882 = vpop.trf.xlu0
    %v883 = vpop.trf.xlu0
    %v884 = vpop.trf.xlu0
    %v885 = vpop.trf.xlu0
    %v886 = vpop.trf.xlu0
    %v887 = vpop.trf.xlu0
    %v888 = vpop.trf.xlu0
    %v889 = vpop.trf.xlu0
    %v890 = vpop.trf.xlu0
    %891 = vxpose.xlu0.b32.start [1/16] %v790, 128
    %892 = vxpose.xlu0.b32.cont [2/16] 0.0, 128
    %893 = vxpose.xlu0.b32.cont [3/16] 0.0, 128
    %894 = vxpose.xlu0.b32.cont [4/16] 0.0, 128
    %895 = vxpose.xlu0.b32.cont [5/16] 0.0, 128
    %896 = vxpose.xlu0.b32.cont [6/16] 0.0, 128
    %897 = vxpose.xlu0.b32.cont [7/16] 0.0, 128
    %898 = vxpose.xlu0.b32.cont [8/16] 0.0, 128
    %899 = vxpose.xlu0.b32.cont [9/16] 0.0, 128
    %900 = vxpose.xlu0.b32.cont [10/16] 0.0, 128
    %901 = vxpose.xlu0.b32.cont [11/16] 0.0, 128
    %902 = vxpose.xlu0.b32.cont [12/16] 0.0, 128
    %903 = vxpose.xlu0.b32.cont [13/16] 0.0, 128
    %904 = vxpose.xlu0.b32.cont [14/16] 0.0, 128
    %905 = vxpose.xlu0.b32.cont [15/16] 0.0, 128
    %906 = vxpose.xlu0.b32.end [16/16] 0.0, 128
    %v907 = vpop.trf.xlu0
    %v908 = vpop.trf.xlu0
    %v909 = vpop.trf.xlu0
    %v910 = vpop.trf.xlu0
    %v911 = vpop.trf.xlu0
    %v912 = vpop.trf.xlu0
    %v913 = vpop.trf.xlu0
    %v914 = vpop.trf.xlu0
    %v915 = vpop.trf.xlu0
    %v916 = vpop.trf.xlu0
    %v917 = vpop.trf.xlu0
    %v918 = vpop.trf.xlu0
    %v919 = vpop.trf.xlu0
    %v920 = vpop.trf.xlu0
    %v921 = vpop.trf.xlu0
    %v922 = vpop.trf.xlu0
    %923 = vxpose.xlu0.b32.start [1/16] %v791, 128
    %924 = vxpose.xlu0.b32.cont [2/16] 0.0, 128
    %925 = vxpose.xlu0.b32.cont [3/16] 0.0, 128
    %926 = vxpose.xlu0.b32.cont [4/16] 0.0, 128
    %927 = vxpose.xlu0.b32.cont [5/16] 0.0, 128
    %928 = vxpose.xlu0.b32.cont [6/16] 0.0, 128
    %929 = vxpose.xlu0.b32.cont [7/16] 0.0, 128
    %930 = vxpose.xlu0.b32.cont [8/16] 0.0, 128
    %931 = vxpose.xlu0.b32.cont [9/16] 0.0, 128
    %932 = vxpose.xlu0.b32.cont [10/16] 0.0, 128
    %933 = vxpose.xlu0.b32.cont [11/16] 0.0, 128
    %934 = vxpose.xlu0.b32.cont [12/16] 0.0, 128
    %935 = vxpose.xlu0.b32.cont [13/16] 0.0, 128
    %936 = vxpose.xlu0.b32.cont [14/16] 0.0, 128
    %937 = vxpose.xlu0.b32.cont [15/16] 0.0, 128
    %938 = vxpose.xlu0.b32.end [16/16] 0.0, 128
    %v939 = vpop.trf.xlu0
    %v940 = vpop.trf.xlu0
    %v941 = vpop.trf.xlu0
    %v942 = vpop.trf.xlu0
    %v943 = vpop.trf.xlu0
    %v944 = vpop.trf.xlu0
    %v945 = vpop.trf.xlu0
    %v946 = vpop.trf.xlu0
    %v947 = vpop.trf.xlu0
    %v948 = vpop.trf.xlu0
    %v949 = vpop.trf.xlu0
    %v950 = vpop.trf.xlu0
    %v951 = vpop.trf.xlu0
    %v952 = vpop.trf.xlu0
    %v953 = vpop.trf.xlu0
    %v954 = vpop.trf.xlu0
    %955 = vxpose.xlu0.b32.start [1/16] %v792, 128
    %956 = vxpose.xlu0.b32.cont [2/16] 0.0, 128
    %957 = vxpose.xlu0.b32.cont [3/16] 0.0, 128
    %958 = vxpose.xlu0.b32.cont [4/16] 0.0, 128
    %959 = vxpose.xlu0.b32.cont [5/16] 0.0, 128
    %960 = vxpose.xlu0.b32.cont [6/16] 0.0, 128
    %961 = vxpose.xlu0.b32.cont [7/16] 0.0, 128
    %962 = vxpose.xlu0.b32.cont [8/16] 0.0, 128
    %963 = vxpose.xlu0.b32.cont [9/16] 0.0, 128
    %964 = vxpose.xlu0.b32.cont [10/16] 0.0, 128
    %965 = vxpose.xlu0.b32.cont [11/16] 0.0, 128
    %966 = vxpose.xlu0.b32.cont [12/16] 0.0, 128
    %967 = vxpose.xlu0.b32.cont [13/16] 0.0, 128
    %968 = vxpose.xlu0.b32.cont [14/16] 0.0, 128
    %969 = vxpose.xlu0.b32.cont [15/16] 0.0, 128
    %970 = vxpose.xlu0.b32.end [16/16] 0.0, 128
    %v971 = vpop.trf.xlu0
    %v972 = vpop.trf.xlu0
    %v973 = vpop.trf.xlu0
    %v974 = vpop.trf.xlu0
    %v975 = vpop.trf.xlu0
    %v976 = vpop.trf.xlu0
    %v977 = vpop.trf.xlu0
    %v978 = vpop.trf.xlu0
    %v979 = vpop.trf.xlu0
    %v980 = vpop.trf.xlu0
    %v981 = vpop.trf.xlu0
    %v982 = vpop.trf.xlu0
    %v983 = vpop.trf.xlu0
    %v984 = vpop.trf.xlu0
    %v985 = vpop.trf.xlu0
    %v986 = vpop.trf.xlu0
    %987 = vxpose.xlu0.b32.start [1/16] %v793, 128
    %988 = vxpose.xlu0.b32.cont [2/16] 0.0, 128
    %989 = vxpose.xlu0.b32.cont [3/16] 0.0, 128
    %990 = vxpose.xlu0.b32.cont [4/16] 0.0, 128
    %991 = vxpose.xlu0.b32.cont [5/16] 0.0, 128
    %992 = vxpose.xlu0.b32.cont [6/16] 0.0, 128
    %993 = vxpose.xlu0.b32.cont [7/16] 0.0, 128
    %994 = vxpose.xlu0.b32.cont [8/16] 0.0, 128
    %995 = vxpose.xlu0.b32.cont [9/16] 0.0, 128
    %996 = vxpose.xlu0.b32.cont [10/16] 0.0, 128
    %997 = vxpose.xlu0.b32.cont [11/16] 0.0, 128
    %998 = vxpose.xlu0.b32.cont [12/16] 0.0, 128
    %999 = vxpose.xlu0.b32.cont [13/16] 0.0, 128
    %1000 = vxpose.xlu0.b32.cont [14/16] 0.0, 128
    %1001 = vxpose.xlu0.b32.cont [15/16] 0.0, 128
    %1002 = vxpose.xlu0.b32.end [16/16] 0.0, 128
    %v1003 = vpop.trf.xlu0
    %v1004 = vpop.trf.xlu0
    %v1005 = vpop.trf.xlu0
    %v1006 = vpop.trf.xlu0
    %v1007 = vpop.trf.xlu0
    %v1008 = vpop.trf.xlu0
    %v1009 = vpop.trf.xlu0
    %v1010 = vpop.trf.xlu0
    %v1011 = vpop.trf.xlu0
    %v1012 = vpop.trf.xlu0
    %v1013 = vpop.trf.xlu0
    %v1014 = vpop.trf.xlu0
    %v1015 = vpop.trf.xlu0
    %v1016 = vpop.trf.xlu0
    %v1017 = vpop.trf.xlu0
    %v1018 = vpop.trf.xlu0
    %1019 = vxpose.xlu0.b32.start [1/16] %v794, 128
    %1020 = vxpose.xlu0.b32.cont [2/16] 0.0, 128
    %1021 = vxpose.xlu0.b32.cont [3/16] 0.0, 128
    %1022 = vxpose.xlu0.b32.cont [4/16] 0.0, 128
    %1023 = vxpose.xlu0.b32.cont [5/16] 0.0, 128
    %1024 = vxpose.xlu0.b32.cont [6/16] 0.0, 128
    %1025 = vxpose.xlu0.b32.cont [7/16] 0.0, 128
    %1026 = vxpose.xlu0.b32.cont [8/16] 0.0, 128
    %1027 = vxpose.xlu0.b32.cont [9/16] 0.0, 128
    %1028 = vxpose.xlu0.b32.cont [10/16] 0.0, 128
    %1029 = vxpose.xlu0.b32.cont [11/16] 0.0, 128
    %1030 = vxpose.xlu0.b32.cont [12/16] 0.0, 128
    %1031 = vxpose.xlu0.b32.cont [13/16] 0.0, 128
    %1032 = vxpose.xlu0.b32.cont [14/16] 0.0, 128
    %1033 = vxpose.xlu0.b32.cont [15/16] 0.0, 128
    %1034 = vxpose.xlu0.b32.end [16/16] 0.0, 128
    %v1035 = vpop.trf.xlu0
    %v1036 = vpop.trf.xlu0
    %v1037 = vpop.trf.xlu0
    %v1038 = vpop.trf.xlu0
    %v1039 = vpop.trf.xlu0
    %v1040 = vpop.trf.xlu0
    %v1041 = vpop.trf.xlu0
    %v1042 = vpop.trf.xlu0
    %v1043 = vpop.trf.xlu0
    %v1044 = vpop.trf.xlu0
    %v1045 = vpop.trf.xlu0
    %v1046 = vpop.trf.xlu0
    %v1047 = vpop.trf.xlu0
    %v1048 = vpop.trf.xlu0
    %v1049 = vpop.trf.xlu0
    %v1050 = vpop.trf.xlu0
    %vm1051 = vcmask 64512
    %1052 = vst.msk [vmem:[#allocation3] sm:$0xff] %vm1051, %v811
    %1053 = vst.msk [vmem:[#allocation3 + $0x8] sm:$0xff] %vm1051, %v843
    %1054 = vst.msk [vmem:[#allocation3 + $0x10] sm:$0xff] %vm1051, %v875
    %1055 = vst.msk [vmem:[#allocation3 + $0x18] sm:$0xff] %vm1051, %v907
    %1056 = vst.msk [vmem:[#allocation3 + $0x20] sm:$0xff] %vm1051, %v939
    %1057 = vst.msk [vmem:[#allocation3 + $0x28] sm:$0xff] %vm1051, %v971
    %1058 = vst.msk [vmem:[#allocation3 + $0x30] sm:$0xff] %vm1051, %v1003
    %1059 = vst.msk [vmem:[#allocation3 + $0x38] sm:$0xff] %vm1051, %v1035
    // Predicated region
    $region6: #{maxpool2d.1} parent=1 // pred_check
      _
    $region7: #{maxpool2d.1} parent=1 // pred_check_branch
      %1061 = sbr.rel (0) target = $region9
    $region8: #{maxpool2d.1} parent=1 // pred_region
      %1063 = vsyncadd [#allocation4], 0
      %s1064 = sshll.u32 [#allocation3], 4
      %s1065 = int_to_ptr.vmem [resolvable:$true] %s1064
      %s1066 = sshll.u32 %s1, 4
      %s1067 = int_to_ptr.hbm [resolvable:$true] %s1066
      %1072 = dma.vmem_to_hbm [thread:$0]  %s1065, 1024, %s1067, [#allocation4], 128, 128, 8
    $region9: #{maxpool2d.1} parent=1 // pred_fallthru
      _
    // Predicated region
    $region10: #{maxpool2d.1} parent=1 // pred_check
      _
    $region11: #{maxpool2d.1} parent=1 // pred_check_branch
      %1074 = sbr.rel (0) target = $region13
    $region12: #{maxpool2d.1} parent=1 // pred_region
      %1076 = dma.done [#allocation4], 1024
    $region13: #{maxpool2d.1} parent=1 // pred_fallthru
      _
    %1077 = vsyncpa [#allocation4], 1

</llo_original>
